<compile_context>
chip_gen: v7x
topology: tpu7x:2x2x1
jax: 0.10.0
libtpu: 0.0.40
codegen_flags: <defaults>
</compile_context>

<pallas_src>
import functools

import jax
import jax.numpy as jnp
from jax import lax
from jax.experimental import pallas as pl
from jax.experimental.pallas import tpu as pltpu


# ----------------------------- sizes & packing layout -------------------------

F_IN, HID, OUT = 3, 16, 7      # logical dims of the PyTorch module
FP = 8                          # padded input-feature dim (sublane multiple)
HP = 128                        # padded hidden lanes
OP = 128                        # padded output lanes (lane-dense output)

# Row layout of the single packed parameter buffer (all offsets 8-aligned):
W1_ROW = 0                      # rows [0, 8)    : W1  (FP, HP)
W2_ROW = FP                     # rows [8, 136)  : W2  (HP, HP)
W3_ROW = FP + HP                # rows [136, 264): W3  (HP, OP)
B1_ROW = FP + 2 * HP            # row  264       : b1  (1, HP)
B2_ROW = B1_ROW + 8             # row  272       : b2  (1, HP)
B3_ROW = B2_ROW + 8             # row  280       : b3  (1, OP)
P_ROWS = B3_ROW + 8             # 288 rows total (~144 KiB)


# ----------------------------- Pallas kernel ---------------------------------

def _gnn_kernel(a_ref, x_ref, p_ref, out_ref):
    n = a_ref.shape[1]

    a = a_ref[0]                                                 # (N, N) raw scattered A
    x = x_ref[0]                                                 # (N, FP)

    w1 = p_ref[W1_ROW:W1_ROW + FP, :]                            # (FP, HP)
    w2 = p_ref[W2_ROW:W2_ROW + HP, :]                            # (HP, HP)
    w3 = p_ref[W3_ROW:W3_ROW + HP, :]                            # (HP, OP)
    b1 = p_ref[B1_ROW:B1_ROW + 1, :]                             # (1, HP)
    b2 = p_ref[B2_ROW:B2_ROW + 1, :]                             # (1, HP)
    b3 = p_ref[B3_ROW:B3_ROW + 1, :]                             # (1, OP)

    # ---- fused gcn_norm tail (was in the JAX wrapper) ----
    rows = lax.broadcasted_iota(jnp.int32, (n, n), 0)
    cols = lax.broadcasted_iota(jnp.int32, (n, n), 1)
    a = a + jnp.where(rows == cols, 1.0, 0.0)                    # A + I   (VPU)
    deg = jnp.sum(a, axis=1, keepdims=True)                      # (N, 1)  (XLU lane-reduce)
    dinv = jnp.where(deg > 0.0, lax.rsqrt(deg), 0.0)             # (N, 1)  (EUP)
    # a_hat @ v == dinv * ((A+I) @ (dinv * v))  -> only row scalings, no transpose.

    # conv1: relu( a_hat @ (X @ W1) + b1 )
    xw1 = jnp.dot(x, w1, preferred_element_type=jnp.float32)     # (N, HP)
    h1 = dinv * jnp.dot(a, dinv * xw1,
                        preferred_element_type=jnp.float32) + b1
    h1 = jnp.maximum(h1, 0.0)

    # conv2: relu( a_hat @ (H1 @ W2) + b2 )
    hw2 = jnp.dot(h1, w2, preferred_element_type=jnp.float32)
    h2 = dinv * jnp.dot(a, dinv * hw2,
                        preferred_element_type=jnp.float32) + b2
    h2 = jnp.maximum(h2, 0.0)

    # global_add_pool (batch=None -> single graph): sum over node rows.
    # N is NOT padded, so this sum is exact (padded-row bias+relu trap avoided).
    pooled = jnp.sum(h2, axis=0, keepdims=True)                  # (1, HP)

    # final Linear: pooled @ W3 + b3  (padded output lanes stay zero -> sliced off)
    out_ref[0] = (jnp.dot(pooled, w3, preferred_element_type=jnp.float32)
                  + b3)                                          # (1, OP)


# ----------------------------- wrappers ----------------------------------------

@functools.partial(jax.jit, static_argnames=("n_nodes",))
def gnn_forward_batched(x, edge_index, edge_weight, packed_params, n_nodes):
    """Forward pass for B independent graphs in ONE pallas_call.

    x:           (B, N, 3)   float32 node features
    edge_index:  (B, 2, E)   int32   [source; target]
    edge_weight: (B, E)      float32
    packed_params: (P_ROWS, HP) buffer built once by `pack_params`.
    Returns (B, 7).
    """
    B = x.shape[0]
    N = n_nodes

    # Raw scattered adjacency A[target, source] (NO self-loops, NO normalization —
    # that tail is fused into the kernel). Dense scatter stays in plain JAX.
    # TODO(synk): for large E, feed the edge list via scalar prefetch instead.
    def scatter(ei, ew):
        return jnp.zeros((N, N), jnp.float32).at[ei[1], ei[0]].add(ew)

    a_raw = jax.vmap(scatter)(edge_index, edge_weight)           # (B, N, N)

    # Zero-pad node features to FP lanes (one tiny fused HLO for the whole batch).
    xp = jnp.zeros((B, N, FP), jnp.float32).at[:, :, :F_IN].set(x)

    out_padded = pl.pallas_call(
        _gnn_kernel,
        out_shape=jax.ShapeDtypeStruct((B, 1, OP), jnp.float32),
        grid=(B,),
        in_specs=[
            pl.BlockSpec((1, N, N), lambda g: (g, 0, 0)),        # per-graph adjacency
            pl.BlockSpec((1, N, FP), lambda g: (g, 0, 0)),       # per-graph features
            pl.BlockSpec((P_ROWS, HP), lambda g: (0, 0)),        # params: resident
        ],
        out_specs=pl.BlockSpec((1, 1, OP), lambda g: (g, 0, 0)),
        compiler_params=pltpu.CompilerParams(
            dimension_semantics=("parallel",)),                  # v7x: 2 TCs share graphs
    )(a_raw, xp, packed_params)

    return out_padded[:, 0, :OUT]                                # (B, 7)


def gnn_forward(x, edge_index, edge_weight, packed_params, n_nodes):
    """Single-graph forward matching the PyTorch module signature (batch=None)."""
    out = gnn_forward_batched(x[None], edge_index[None], edge_weight[None],
                              packed_params, n_nodes=n_nodes)
    return out                                                    # (1, 7)


# ----------------------------- parameter init / packing ------------------------

def init_params(key):
    """Deterministic synthetic params matching the PyTorch module shapes."""
    k1, k2, k3, k4 = jax.random.split(key, 4)
    # GCNConv(3, 16): weight (3, 16) applied as x @ W, bias (16,)
    w1 = jax.random.normal(k1, (3, 16), jnp.float32) * 0.5
    b1 = jax.random.normal(k2, (16,), jnp.float32) * 0.1
    # GCNConv(16, 16)
    w2 = jax.random.normal(k3, (16, 16), jnp.float32) * 0.25
    b2 = jnp.zeros((16,), jnp.float32)
    # Linear(16, 7): torch weight is (7, 16); store transposed (16, 7) for x @ W
    w3 = jax.random.normal(k4, (16, 7), jnp.float32) * 0.25
    b3 = jnp.full((7,), 0.05, jnp.float32)
    return (w1, b1, w2, b2, w3, b3)


def pack_params(params):
    """Zero-pad and pack all weights/biases into ONE (P_ROWS, 128) buffer. Call once."""
    w1, b1, w2, b2, w3, b3 = params
    buf = jnp.zeros((P_ROWS, HP), jnp.float32)
    buf = buf.at[W1_ROW:W1_ROW + F_IN, :HID].set(w1)
    buf = buf.at[W2_ROW:W2_ROW + HID, :HID].set(w2)
    buf = buf.at[W3_ROW:W3_ROW + HID, :OUT].set(w3)
    buf = buf.at[B1_ROW, :HID].set(b1)
    buf = buf.at[B2_ROW, :HID].set(b2)
    buf = buf.at[B3_ROW, :OUT].set(b3)
    return buf


# ----------------------------- pure-JAX reference ------------------------------

def gnn_reference(x, edge_index, edge_weight, params, n_nodes):
    N = n_nodes
    row, col = edge_index[0], edge_index[1]
    A = jnp.zeros((N, N), jnp.float32).at[col, row].add(edge_weight)
    A = A + jnp.eye(N, dtype=jnp.float32)
    deg = jnp.sum(A, axis=1)
    dinv = jnp.where(deg > 0, jax.lax.rsqrt(deg), 0.0)
    a_hat = dinv[:, None] * A * dinv[None, :]
    w1, b1, w2, b2, w3, b3 = params
    h1 = jax.nn.relu(a_hat @ (x @ w1) + b1)
    h2 = jax.nn.relu(a_hat @ (h1 @ w2) + b2)
    pooled = jnp.sum(h2, axis=0, keepdims=True)            # global_add_pool, batch=None
    return pooled @ w3 + b3


# ----------------------------------- main --------------------------------------

if __name__ == "__main__":
    key = jax.random.PRNGKey(0)
    k_feat, k_w, k_param = jax.random.split(key, 3)

    B, N = 4, 8   # 4 independent graphs of 8 nodes, one pallas_call for all of them
    x = jax.random.normal(k_feat, (B, N, F_IN), jnp.float32)

    # bidirectional ring topology (shared), per-graph random edge weights
    src = jnp.arange(N, dtype=jnp.int32)
    dst = (src + 1) % N
    ei = jnp.stack([jnp.concatenate([src, dst]),
                    jnp.concatenate([dst, src])], axis=0)          # (2, 16)
    edge_index = jnp.broadcast_to(ei, (B, 2, 2 * N))
    edge_weight = jax.random.uniform(k_w, (B, 2 * N), jnp.float32,
                                     minval=0.5, maxval=1.5)

    params = init_params(k_param)
    packed = jax.block_until_ready(pack_params(params))   # padded/packed ONCE

    # batched path (B graphs per kernel call)
    out = gnn_forward_batched(x, edge_index, edge_weight, packed, n_nodes=N)
    out = jax.block_until_ready(out)
    assert out.shape == (B, OUT), out.shape

    for g in range(B):
        ref = gnn_reference(x[g], edge_index[g], edge_weight[g], params, N)
        assert jnp.allclose(out[g:g + 1], ref, atol=1e-4, rtol=1e-4), (g, out[g], ref)

    # single-graph path matching the original module signature (batch=None)
    out1 = jax.block_until_ready(
        gnn_forward(x[0], edge_index[0], edge_weight[0], packed, n_nodes=N))
    assert out1.shape == (1, OUT)
    assert jnp.allclose(out1, out[0:1], atol=1e-5, rtol=1e-5)

    print("KERNEL_OK")
</pallas_src>

<mosaic_0001>
module attributes {stable_mosaic.version = 11 : i64} {
  func.func private @main(%arg0: i32) attributes {dimension_semantics = [#tpu.dimension_semantics<core_parallel>], iteration_bounds = array<i64: 2>, tpu.core_type = #tpu.core_type<sc_scalar_subcore>, window_params = []} {
    return
  }
}

module attributes {stable_mosaic.version = 11 : i64} {
  func.func private @main(%arg0: i32) attributes {dimension_semantics = [#tpu.dimension_semantics<core_parallel>], iteration_bounds = array<i64: 2>, tpu.core_type = #tpu.core_type<sc_scalar_subcore>, window_params = []} {
    return
  }
}

module attributes {stable_mosaic.version = 11 : i64} {
  func.func @_gnn_kernel(%arg0: i32, %arg1: memref<1x8x8xf32, #tpu.memory_space<vmem>>, %arg2: memref<1x8x8xf32, #tpu.memory_space<vmem>>, %arg3: memref<288x128xf32, #tpu.memory_space<vmem>>, %arg4: memref<1x1x128xf32, #tpu.memory_space<vmem>>) attributes {dimension_semantics = [#tpu.dimension_semantics<parallel>], iteration_bounds = array<i64: 4>, scalar_prefetch = 0 : i64, scratch_operands = 0 : i64, tpu.core_type = #tpu.core_type<tc>, window_params = [{transform_indices = @transform_0, window_bounds = array<i64: 1, 8, 8>}, {transform_indices = @transform_1, window_bounds = array<i64: 1, 8, 8>}, {pipeline_mode = #tpu.pipeline_mode<synchronous>, transform_indices = @transform_2, window_bounds = array<i64: 288, 128>}, {transform_indices = @transform_3, window_bounds = array<i64: 1, 1, 128>}]} {
    %c0 = arith.constant 0 : index
    %c0_0 = arith.constant 0 : index
    %c0_1 = arith.constant 0 : index
    %0 = vector.load %arg1[%c0, %c0_0, %c0_1] : memref<1x8x8xf32, #tpu.memory_space<vmem>>, vector<1x8x8xf32>
    %1 = vector.shape_cast %0 : vector<1x8x8xf32> to vector<8x8xf32>
    %c0_2 = arith.constant 0 : index
    %c0_3 = arith.constant 0 : index
    %c0_4 = arith.constant 0 : index
    %2 = vector.load %arg2[%c0_2, %c0_3, %c0_4] : memref<1x8x8xf32, #tpu.memory_space<vmem>>, vector<1x8x8xf32>
    %3 = vector.shape_cast %2 : vector<1x8x8xf32> to vector<8x8xf32>
    %c0_5 = arith.constant 0 : index
    %c0_6 = arith.constant 0 : index
    %4 = vector.load %arg3[%c0_5, %c0_6] : memref<288x128xf32, #tpu.memory_space<vmem>>, vector<8x128xf32>
    %c8 = arith.constant 8 : index
    %c0_7 = arith.constant 0 : index
    %5 = vector.load %arg3[%c8, %c0_7] : memref<288x128xf32, #tpu.memory_space<vmem>>, vector<128x128xf32>
    %c136 = arith.constant 136 : index
    %c0_8 = arith.constant 0 : index
    %6 = vector.load %arg3[%c136, %c0_8] : memref<288x128xf32, #tpu.memory_space<vmem>>, vector<128x128xf32>
    %c264 = arith.constant 264 : index
    %c0_9 = arith.constant 0 : index
    %7 = vector.load %arg3[%c264, %c0_9] : memref<288x128xf32, #tpu.memory_space<vmem>>, vector<1x128xf32>
    %c272 = arith.constant 272 : index
    %c0_10 = arith.constant 0 : index
    %8 = vector.load %arg3[%c272, %c0_10] : memref<288x128xf32, #tpu.memory_space<vmem>>, vector<1x128xf32>
    %c280 = arith.constant 280 : index
    %c0_11 = arith.constant 0 : index
    %9 = vector.load %arg3[%c280, %c0_11] : memref<288x128xf32, #tpu.memory_space<vmem>>, vector<1x128xf32>
    %10 = tpu.iota {dimensions = array<i32: 0>} : vector<8x8xi32>
    %11 = tpu.iota {dimensions = array<i32: 1>} : vector<8x8xi32>
    %12 = arith.cmpi eq, %10, %11 : vector<8x8xi32>
    %cst = arith.constant 1.000000e+00 : f32
    %cst_12 = arith.constant 0.000000e+00 : f32
    %13 = vector.broadcast %cst : f32 to vector<8x8xf32>
    %14 = vector.broadcast %cst_12 : f32 to vector<8x8xf32>
    %15 = arith.select %12, %13, %14 : vector<8x8xi1>, vector<8x8xf32>
    %16 = arith.addf %1, %15 : vector<8x8xf32>
    %cst_13 = arith.constant dense<0.000000e+00> : vector<8xf32>
    %17 = vector.multi_reduction <add>, %16, %cst_13 [1] : vector<8x8xf32> to vector<8xf32>
    %18 = vector.shape_cast %17 : vector<8xf32> to vector<8x1xf32>
    %cst_14 = arith.constant 0.000000e+00 : f32
    %19 = vector.broadcast %cst_14 : f32 to vector<8x1xf32>
    %20 = arith.cmpf ogt, %18, %19 : vector<8x1xf32>
    %21 = math.rsqrt %18 : vector<8x1xf32>
    %cst_15 = arith.constant 0.000000e+00 : f32
    %22 = vector.broadcast %cst_15 : f32 to vector<8x1xf32>
    %23 = arith.select %20, %21, %22 : vector<8x1xi1>, vector<8x1xf32>
    %cst_16 = arith.constant dense<0.000000e+00> : vector<8x128xf32>
    %24 = tpu.matmul %3, %4, %cst_16 {dimension_numbers = #tpu.dot_dimension_numbers<[1], [0], [0], [1], [0, 0, 1, 1], [], []>} : vector<8x8xf32>, vector<8x128xf32>, vector<8x128xf32> -> vector<8x128xf32>
    %25 = vector.broadcast %23 : vector<8x1xf32> to vector<8x128xf32>
    %26 = arith.mulf %25, %24 : vector<8x128xf32>
    %cst_17 = arith.constant dense<0.000000e+00> : vector<8x128xf32>
    %27 = tpu.matmul %16, %26, %cst_17 {dimension_numbers = #tpu.dot_dimension_numbers<[1], [0], [0], [1], [0, 0, 1, 1], [], []>} : vector<8x8xf32>, vector<8x128xf32>, vector<8x128xf32> -> vector<8x128xf32>
    %28 = vector.broadcast %23 : vector<8x1xf32> to vector<8x128xf32>
    %29 = arith.mulf %28, %27 : vector<8x128xf32>
    %30 = vector.broadcast %7 : vector<1x128xf32> to vector<8x128xf32>
    %31 = arith.addf %29, %30 : vector<8x128xf32>
    %cst_18 = arith.constant 0.000000e+00 : f32
    %32 = vector.broadcast %cst_18 : f32 to vector<8x128xf32>
    %33 = arith.maximumf %31, %32 : vector<8x128xf32>
    %cst_19 = arith.constant dense<0.000000e+00> : vector<8x128xf32>
    %34 = tpu.matmul %33, %5, %cst_19 {dimension_numbers = #tpu.dot_dimension_numbers<[1], [0], [0], [1], [0, 0, 1, 1], [], []>} : vector<8x128xf32>, vector<128x128xf32>, vector<8x128xf32> -> vector<8x128xf32>
    %35 = vector.broadcast %23 : vector<8x1xf32> to vector<8x128xf32>
    %36 = arith.mulf %35, %34 : vector<8x128xf32>
    %cst_20 = arith.constant dense<0.000000e+00> : vector<8x128xf32>
    %37 = tpu.matmul %16, %36, %cst_20 {dimension_numbers = #tpu.dot_dimension_numbers<[1], [0], [0], [1], [0, 0, 1, 1], [], []>} : vector<8x8xf32>, vector<8x128xf32>, vector<8x128xf32> -> vector<8x128xf32>
    %38 = vector.broadcast %23 : vector<8x1xf32> to vector<8x128xf32>
    %39 = arith.mulf %38, %37 : vector<8x128xf32>
    %40 = vector.broadcast %8 : vector<1x128xf32> to vector<8x128xf32>
    %41 = arith.addf %39, %40 : vector<8x128xf32>
    %cst_21 = arith.constant 0.000000e+00 : f32
    %42 = vector.broadcast %cst_21 : f32 to vector<8x128xf32>
    %43 = arith.maximumf %41, %42 : vector<8x128xf32>
    %cst_22 = arith.constant dense<0.000000e+00> : vector<128xf32>
    %44 = vector.multi_reduction <add>, %43, %cst_22 [0] : vector<8x128xf32> to vector<128xf32>
    %45 = vector.shape_cast %44 : vector<128xf32> to vector<1x128xf32>
    %cst_23 = arith.constant dense<0.000000e+00> : vector<1x128xf32>
    %46 = tpu.matmul %45, %6, %cst_23 {dimension_numbers = #tpu.dot_dimension_numbers<[1], [0], [0], [1], [0, 0, 1, 1], [], []>} : vector<1x128xf32>, vector<128x128xf32>, vector<1x128xf32> -> vector<1x128xf32>
    %47 = arith.addf %46, %9 : vector<1x128xf32>
    %c0_24 = arith.constant 0 : index
    %c0_25 = arith.constant 0 : index
    %c0_26 = arith.constant 0 : index
    %48 = vector.load %arg4[%c0_24, %c0_25, %c0_26] : memref<1x1x128xf32, #tpu.memory_space<vmem>>, vector<1x1x128xf32>
    %49 = vector.shape_cast %48 : vector<1x1x128xf32> to vector<1x128xf32>
    %50 = vector.shape_cast %47 : vector<1x128xf32> to vector<1x1x128xf32>
    tpu.vector_store %arg4[%c0_24, %c0_25, %c0_26], %50 {strides = array<i32>} : memref<1x1x128xf32, #tpu.memory_space<vmem>>, vector<1x1x128xf32>,
    return
  }
  func.func @transform_0(%arg0: i32) -> (i32, i32, i32) {
    %c0_i32 = arith.constant 0 : i32
    %c0_i32_0 = arith.constant 0 : i32
    %c0_i32_1 = arith.constant 0 : i32
    return %arg0, %c0_i32, %c0_i32_0 : i32, i32, i32
  }
  func.func @transform_1(%arg0: i32) -> (i32, i32, i32) {
    %c0_i32 = arith.constant 0 : i32
    %c0_i32_0 = arith.constant 0 : i32
    %c0_i32_1 = arith.constant 0 : i32
    return %arg0, %c0_i32, %c0_i32_0 : i32, i32, i32
  }
  func.func @transform_2(%arg0: i32) -> (i32, i32) {
    %c0_i32 = arith.constant 0 : i32
    %c0_i32_0 = arith.constant 0 : i32
    %c0_i32_1 = arith.constant 0 : i32
    return %c0_i32, %c0_i32_0 : i32, i32
  }
  func.func @transform_3(%arg0: i32) -> (i32, i32, i32) {
    %c0_i32 = arith.constant 0 : i32
    %c0_i32_0 = arith.constant 0 : i32
    %c0_i32_1 = arith.constant 0 : i32
    return %arg0, %c0_i32, %c0_i32_0 : i32, i32, i32
  }
}

</mosaic_0001>

<llo_original>
// kernel: gnn_forward_batched.1
$region0: #{gnn_forward_batched.1}
  #allocation0 [shape = 'u32[]', space=smem, size = 0x4, offset = 0x4, fixed_abs, tag = 'smem constant byte address 0x4 - core index']
  #allocation1 [shape = 'u32[144,128]{1,0:T(1,128)}', space=vmem, size = 0x12000, scoped, tag = 'internal scratch']
  %s0 = inlined_call_operand.hbm [shape: f32[4,8,8], index: 0, kind: input, shape index: {}]
  %s1 = inlined_call_operand.vmem [shape: f32[4,8,8], index: 1, kind: input, shape index: {}]
  %s2 = inlined_call_operand.vmem [shape: f32[288,128], index: 2, kind: input, shape index: {}]
  %s3 = inlined_call_operand.hbm [shape: f32[4,1,128], index: 3, kind: output, shape index: {}]
  %s4 = sld [smem:[#allocation0]]
  $region49: #{gnn_forward_batched.1} parent=0
    _
  %s6 = ssub.s32 1, %s4
  %s7 = scalar_select 0, %s6, %s4
  $region1: #{gnn_forward_batched.1} parent=0
    #allocation2 [shape = 'u8[8192]{0}', space=vmem, size = 0x2000, scoped, tag = 'input window, operand 0']
    #allocation3 [shape = 's32[2]{0}', space=sflag, size = 0x8, scoped, tag = 'scoped memory for gnn_forward_batched.1']
    #allocation4 [shape = 's32[2]{0}', space=sflag, size = 0x8, scoped, tag = 'scoped memory for gnn_forward_batched.1']
    #allocation5 [shape = 'u8[1024]{0}', space=vmem, size = 0x400, scoped, tag = 'output window, operand 0']
    %8 = vsyncpa [#allocation3], 0
    %s9 = scalar_lea.sflag [#allocation3], 1
    %10 = vsyncpa %s9, 0
    %11 = vsyncpa [#allocation4], 0
    %s12 = scalar_lea.sflag [#allocation4], 1
    %13 = vsyncpa %s12, 0
    loop: start=0, step=1, limit=6
    $region2: #{gnn_forward_batched.1} parent=1 // loop_pre_header
      _
    $region3: #{gnn_forward_batched.1} parent=1 // loop_header
      %s15 = sphi 0, %s19
      %p16 = scmp.ge.s32.totalorder %s15, 6
      %s25 = sphi 0, %s27
      %s28 = sphi 0, %s25
      %s29 = sphi 0, %s28
      %s45 = sphi 0, %s29
      %s51 = sphi 0, %s53
      %s54 = sphi 0, %s51
      %s55 = sphi 0, %s54
      %s71 = sphi 0, %s55
      %s75 = sphi 0, %s75
      %s77 = sphi 0, %s75
      %s78 = sphi 0, %s77
      %s92 = sphi 0, %s78
      %s98 = sphi 0, %s100
      %s101 = sphi 0, %s98
      %s102 = sphi 0, %s101
      %s118 = sphi 0, %s102
    $region4: #{gnn_forward_batched.1} parent=1 // loop_header_branch
      %18 = sbr.rel (%p16) target = $region8
    $region5: #{gnn_forward_batched.1} parent=1 // loop_body
      %s20 = ssub.s32 %s15, 1
      %s21 = ssub.s32 %s15, 2
      %s22 = sadd.s32 %s15, 1
      %s23 = ssub.s32 %s15, %s22
      %p24 = scmp.eq.s32.totalorder %s23, 0
      %s26 = sadd.s32 %s25, 1
      %s27 = scalar_select %p24, %s25, %s26
      %p30 = pneg %p24
      %p31 = scmp.eq.s32.totalorder %s15, 3
      %p32 = por %p30, %p31
      %p33 = scmp.ne.s32.totalorder %s25, %s28
      %p34 = scmp.eq.s32.totalorder %s15, 0
      %p35 = por %p33, %p34
      %p36 = scmp.ne.s32.totalorder %s25, %s28
      %p37 = scmp.eq.s32.totalorder %s20, 3
      %p38 = por %p36, %p37
      %p39 = scmp.ne.s32.totalorder %s28, %s29
      %p40 = scmp.eq.s32.totalorder %s20, 0
      %p41 = por %p39, %p40
      %p42 = scmp.ne.s32.totalorder %s28, %s29
      %p43 = scmp.eq.s32.totalorder %s21, 3
      %p44 = por %p42, %p43
      %p46 = scmp.ne.s32.totalorder %s29, %s45
      %p47 = scmp.eq.s32.totalorder %s21, 0
      %p48 = por %p46, %p47
      %s49 = ssub.s32 %s15, %s22
      %p50 = scmp.eq.s32.totalorder %s49, 0
      %s52 = sadd.s32 %s51, 1
      %s53 = scalar_select %p50, %s51, %s52
      %p56 = pneg %p50
      %p57 = scmp.eq.s32.totalorder %s15, 3
      %p58 = por %p56, %p57
      %p59 = scmp.ne.s32.totalorder %s51, %s54
      %p60 = scmp.eq.s32.totalorder %s15, 0
      %p61 = por %p59, %p60
      %p62 = scmp.ne.s32.totalorder %s51, %s54
      %p63 = scmp.eq.s32.totalorder %s20, 3
      %p64 = por %p62, %p63
      %p65 = scmp.ne.s32.totalorder %s54, %s55
      %p66 = scmp.eq.s32.totalorder %s20, 0
      %p67 = por %p65, %p66
      %p68 = scmp.ne.s32.totalorder %s54, %s55
      %p69 = scmp.eq.s32.totalorder %s21, 3
      %p70 = por %p68, %p69
      %p72 = scmp.ne.s32.totalorder %s55, %s71
      %p73 = scmp.eq.s32.totalorder %s21, 0
      %p74 = por %p72, %p73
      %s76 = sadd.s32 %s75, 1
      %p79 = scmp.eq.s32.totalorder %s15, 3
      %p80 = scmp.ne.s32.totalorder %s75, %s77
      %p81 = scmp.eq.s32.totalorder %s15, 0
      %p82 = por %p80, %p81
      %p83 = scmp.ne.s32.totalorder %s75, %s77
      %p84 = scmp.eq.s32.totalorder %s20, 3
      %p85 = por %p83, %p84
      %p86 = scmp.ne.s32.totalorder %s77, %s78
      %p87 = scmp.eq.s32.totalorder %s20, 0
      %p88 = por %p86, %p87
      %p89 = scmp.ne.s32.totalorder %s77, %s78
      %p90 = scmp.eq.s32.totalorder %s21, 3
      %p91 = por %p89, %p90
      %p93 = scmp.ne.s32.totalorder %s78, %s92
      %p94 = scmp.eq.s32.totalorder %s21, 0
      %p95 = por %p93, %p94
      %s96 = ssub.s32 %s15, %s22
      %p97 = scmp.eq.s32.totalorder %s96, 0
      %s99 = sadd.s32 %s98, 1
      %s100 = scalar_select %p97, %s98, %s99
      %p103 = pneg %p97
      %p104 = scmp.eq.s32.totalorder %s15, 3
      %p105 = por %p103, %p104
      %p106 = scmp.ne.s32.totalorder %s98, %s101
      %p107 = scmp.eq.s32.totalorder %s15, 0
      %p108 = por %p106, %p107
      %p109 = scmp.ne.s32.totalorder %s98, %s101
      %p110 = scmp.eq.s32.totalorder %s20, 3
      %p111 = por %p109, %p110
      %p112 = scmp.ne.s32.totalorder %s101, %s102
      %p113 = scmp.eq.s32.totalorder %s20, 0
      %p114 = por %p112, %p113
      %p115 = scmp.ne.s32.totalorder %s101, %s102
      %p116 = scmp.eq.s32.totalorder %s21, 3
      %p117 = por %p115, %p116
      %p119 = scmp.ne.s32.totalorder %s102, %s118
      %p120 = scmp.eq.s32.totalorder %s21, 0
      %p121 = por %p119, %p120
      %p122 = scmp.le.s32.totalorder 1, %s15
      %p123 = scmp.lt.s32.totalorder %s15, 5
      %p124 = pnand %p122, %p123
      %p125 = pneg %p124
      // Predicated region
      $region9: #{gnn_forward_batched.1} parent=5 // pred_check
        _
      $region10: #{gnn_forward_batched.1} parent=5 // pred_check_branch
        %127 = sbr.rel (%p124) target = $region12
      $region11: #{gnn_forward_batched.1} parent=5 // pred_region
        %s128 = ssub.s32 %s15, 1
        // Predicated region
        $region13: #{gnn_forward_batched.1} parent=11 // pred_check
          %p129 = pneg %p88
        $region14: #{gnn_forward_batched.1} parent=11 // pred_check_branch
          %131 = sbr.rel (%p129) target = $region16
        $region15: #{gnn_forward_batched.1} parent=11 // pred_region
          _
        $region16: #{gnn_forward_batched.1} parent=11 // pred_fallthru
          _
      $region12: #{gnn_forward_batched.1} parent=5 // pred_fallthru
        _
      %p132 = scmp.lt.s32.totalorder %s15, 4
      // Predicated region
      $region17: #{gnn_forward_batched.1} parent=5 // pred_check
        %p133 = pneg %p132
      $region18: #{gnn_forward_batched.1} parent=5 // pred_check_branch
        %135 = sbr.rel (%p133) target = $region20
      $region19: #{gnn_forward_batched.1} parent=5 // pred_region
        // Predicated region
        $region21: #{gnn_forward_batched.1} parent=19 // pred_check
          %p136 = pneg %p35
        $region22: #{gnn_forward_batched.1} parent=19 // pred_check_branch
          %138 = sbr.rel (%p136) target = $region24
        $region23: #{gnn_forward_batched.1} parent=19 // pred_region
          %s139 = sand.u32 %s25, 1
          %s140 = scalar_lea.sflag [#allocation3], %s139
          %s141 = sand.u32 %s25, 1
          %s142 = smul.addr %s141, 8
          %s143 = scalar_lea.vmem [#allocation2], %s142
          %s145 = ssub.s32 128, 128
          %146 = vsyncadd %s140, %s145
          %s147 = smul.addr %s15, 128
          %s148 = scalar_lea.hbm %s0, %s147
          %s150 = sshll.u32 %s143, 4
          %s151 = int_to_ptr.vmem [resolvable:$true] %s150
          %153 = dma.hbm_to_vmem [thread:$0]  %s148, 128, %s151, %s140
        $region24: #{gnn_forward_batched.1} parent=19 // pred_fallthru
          _
        // Predicated region
        $region25: #{gnn_forward_batched.1} parent=19 // pred_check
          %p154 = pneg %p61
        $region26: #{gnn_forward_batched.1} parent=19 // pred_check_branch
          %156 = sbr.rel (%p154) target = $region28
        $region27: #{gnn_forward_batched.1} parent=19 // pred_region
          %p157 = scmp.lt.s32.totalorder %s15, 3
          %s158 = scalar_select %p157, %s15, 3
          %s159 = smul.addr %s158, 8
          %s160 = scalar_lea.vmem %s1, %s159
        $region28: #{gnn_forward_batched.1} parent=19 // pred_fallthru
          _
      $region20: #{gnn_forward_batched.1} parent=5 // pred_fallthru
        _
      %p161 = scmp.le.s32.totalorder 1, %s15
      %p162 = scmp.lt.s32.totalorder %s15, 5
      %p163 = pnand %p161, %p162
      %p164 = pneg %p163
      // Predicated region
      $region29: #{gnn_forward_batched.1} parent=5 // pred_check
        _
      $region30: #{gnn_forward_batched.1} parent=5 // pred_check_branch
        %166 = sbr.rel (%p163) target = $region32
      $region31: #{gnn_forward_batched.1} parent=5 // pred_region
        %s167 = ssub.s32 %s15, 1
        %s168 = sand.u32 %s28, 1
        %s169 = scalar_lea.sflag [#allocation3], %s168
        %s170 = sand.u32 %s28, 1
        %s171 = smul.addr %s170, 8
        %s172 = scalar_lea.vmem [#allocation2], %s171
        // Predicated region
        $region33: #{gnn_forward_batched.1} parent=31 // pred_check
          %p173 = pneg %p41
        $region34: #{gnn_forward_batched.1} parent=31 // pred_check_branch
          %175 = sbr.rel (%p173) target = $region36
        $region35: #{gnn_forward_batched.1} parent=31 // pred_region
          %176 = dma.done %s169, 128
        $region36: #{gnn_forward_batched.1} parent=31 // pred_fallthru
          _
        %s177 = sand.u32 %s28, 1
        %s178 = scalar_lea.sflag [#allocation3], %s177
        %s179 = sand.u32 %s28, 1
        %s180 = smul.addr %s179, 8
        %s181 = scalar_lea.vmem [#allocation2], %s180
        %p182 = pneg %p41
        %p183 = pneg %p38
        %p184 = scmp.lt.s32.totalorder %s20, 3
        %s185 = scalar_select %p184, %s20, 3
        %s186 = smul.addr %s185, 8
        %s187 = scalar_lea.vmem %s1, %s186
        %p188 = pneg %p67
        %p189 = pneg %p64
        %p190 = pneg %p88
        %p191 = pneg %p85
        %p192 = pneg %p114
        %p193 = pneg %p111
        %s194 = sand.u32 %s101, 1
        %s195 = scalar_lea.sflag [#allocation4], %s194
        %s196 = sand.u32 %s101, 1
        %s197 = scalar_lea.vmem [#allocation5], %s196
        %p198 = scmp.lt.s32.totalorder %s20, 3
        %s199 = scalar_select %p198, %s20, 3
        %s200 = smul.addr %s199, 8
        %s201 = scalar_lea.vmem %s1, %s200
        %v202 = vld [vmem:[%s172] sm:$0xff]
        %v203 = vld [vmem:[%s201] sm:$0xff]
        %v204 = vld [vmem:[%s2] sm:$0xff]
        %v205 = vld [vmem:[%s2 + $0x8] sm:$0xff]
        %v206 = vld [vmem:[%s2 + $0x10] sm:$0xff]
        %v207 = vld [vmem:[%s2 + $0x18] sm:$0xff]
        %v208 = vld [vmem:[%s2 + $0x20] sm:$0xff]
        %v209 = vld [vmem:[%s2 + $0x28] sm:$0xff]
        %v210 = vld [vmem:[%s2 + $0x30] sm:$0xff]
        %v211 = vld [vmem:[%s2 + $0x38] sm:$0xff]
        %v212 = vld [vmem:[%s2 + $0x40] sm:$0xff]
        %v213 = vld [vmem:[%s2 + $0x48] sm:$0xff]
        %v214 = vld [vmem:[%s2 + $0x50] sm:$0xff]
        %v215 = vld [vmem:[%s2 + $0x58] sm:$0xff]
        %v216 = vld [vmem:[%s2 + $0x60] sm:$0xff]
        %v217 = vld [vmem:[%s2 + $0x68] sm:$0xff]
        %v218 = vld [vmem:[%s2 + $0x70] sm:$0xff]
        %v219 = vld [vmem:[%s2 + $0x78] sm:$0xff]
        %v220 = vld [vmem:[%s2 + $0x80] sm:$0xff]
        %v221 = vld [vmem:[%s2 + $0x88] sm:$0xff]
        %v222 = vld [vmem:[%s2 + $0x90] sm:$0xff]
        %v223 = vld [vmem:[%s2 + $0x98] sm:$0xff]
        %v224 = vld [vmem:[%s2 + $0xa0] sm:$0xff]
        %v225 = vld [vmem:[%s2 + $0xa8] sm:$0xff]
        %v226 = vld [vmem:[%s2 + $0xb0] sm:$0xff]
        %v227 = vld [vmem:[%s2 + $0xb8] sm:$0xff]
        %v228 = vld [vmem:[%s2 + $0xc0] sm:$0xff]
        %v229 = vld [vmem:[%s2 + $0xc8] sm:$0xff]
        %v230 = vld [vmem:[%s2 + $0xd0] sm:$0xff]
        %v231 = vld [vmem:[%s2 + $0xd8] sm:$0xff]
        %v232 = vld [vmem:[%s2 + $0xe0] sm:$0xff]
        %v233 = vld [vmem:[%s2 + $0xe8] sm:$0xff]
        %v234 = vld [vmem:[%s2 + $0xf0] sm:$0xff]
        %v235 = vld [vmem:[%s2 + $0xf8] sm:$0xff]
        %v236 = vld [vmem:[%s2 + $0x100] sm:$0xff]
        %v237 = vld [vmem:[%s2 + $0x108] sm:$0x1]
        %v238 = vld [vmem:[%s2 + $0x110] sm:$0x1]
        %v239 = vld [vmem:[%s2 + $0x118] sm:$0x1]
        %v240 = vlaneseq
        %v241 = vshrl.u32 %v240, 7
        %v242 = vlaneseq
        %v243 = vand.u32 %v242, 127
        %vm244 = vcmp.eq.s32.totalorder %v241, %v243
        %v245 = vsel %vm244, 1.0, 0.0
        %v246 = vadd.f32 %v202, %v245
        %vm247 = vcmask 64512
        %v248 = vsel %vm247, %v246, 0.0
        %249 = vadd.xlane.f32.xlu0 %v248
        %v250 = vpop.xlane.xlu0 %249
        %vm251 = vcmp.gt.f32.partialorder %v250, 0.0
        %v252 = vrsqrt.pop %v250
        %v253 = vsel %vm251, %v252, 0.0
        %v255 = vsel %vm247, %v203, 0
        %257 = vmatprep.subr.mxu0 0.0
        %258 = vmatpush1.msra.mxu0 %v204
        %259 = vmatprep.subr.mxu0 0.0
        %260 = vmatpush1.msra.mxu0 0.0
        %261 = vmatprep.subr.mxu0 0.0
        %262 = vmatpush1.msra.mxu0 0.0
        %263 = vmatprep.subr.mxu0 0.0
        %264 = vmatpush1.msra.mxu0 0.0
        %265 = vmatprep.subr.mxu0 0.0
        %266 = vmatpush1.msra.mxu0 0.0
        %267 = vmatprep.subr.mxu0 0.0
        %268 = vmatpush1.msra.mxu0 0.0
        %269 = vmatprep.subr.mxu0 0.0
        %270 = vmatpush1.msra.mxu0 0.0
        %271 = vmatprep.subr.mxu0 0.0
        %272 = vmatpush1.msra.mxu0 0.0
        %273 = vmatprep.subr.mxu0 0.0
        %274 = vmatpush1.msra.mxu0 0.0
        %275 = vmatprep.subr.mxu0 0.0
        %276 = vmatpush1.msra.mxu0 0.0
        %277 = vmatprep.subr.mxu0 0.0
        %278 = vmatpush1.msra.mxu0 0.0
        %279 = vmatprep.subr.mxu0 0.0
        %280 = vmatpush1.msra.mxu0 0.0
        %281 = vmatprep.subr.mxu0 0.0
        %282 = vmatpush1.msra.mxu0 0.0
        %283 = vmatprep.subr.mxu0 0.0
        %284 = vmatpush1.msra.mxu0 0.0
        %285 = vmatprep.subr.mxu0 0.0
        %286 = vmatpush1.msra.mxu0 0.0
        %287 = vmatprep.subr.mxu0 0.0
        %288 = vmatpush1.msra.mxu0 0.0
        %289 = vmatprep.subr.mxu0 0.0
        %290 = vmatpush1.msra.mxu0 0.0
        %291 = vmatprep.subr.mxu0 0.0
        %292 = vmatpush1.msra.mxu0 0.0
        %293 = vmatprep.subr.mxu0 0.0
        %294 = vmatpush1.msra.mxu0 0.0
        %295 = vmatprep.subr.mxu0 0.0
        %296 = vmatpush1.msra.mxu0 0.0
        %297 = vmatprep.subr.mxu0 0.0
        %298 = vmatpush1.msra.mxu0 0.0
        %299 = vmatprep.subr.mxu0 0.0
        %300 = vmatpush1.msra.mxu0 0.0
        %301 = vmatprep.subr.mxu0 0.0
        %302 = vmatpush1.msra.mxu0 0.0
        %303 = vmatprep.subr.mxu0 0.0
        %304 = vmatpush1.msra.mxu0 0.0
        %305 = vmatprep.subr.mxu0 0.0
        %306 = vmatpush1.msra.mxu0 0.0
        %307 = vmatprep.subr.mxu0 0.0
        %308 = vmatpush1.msra.mxu0 0.0
        %309 = vmatprep.subr.mxu0 0.0
        %310 = vmatpush1.msra.mxu0 0.0
        %311 = vmatprep.subr.mxu0 0.0
        %312 = vmatpush1.msra.mxu0 0.0
        %313 = vmatprep.subr.mxu0 0.0
        %314 = vmatpush1.msra.mxu0 0.0
        %315 = vmatprep.subr.mxu0 0.0
        %316 = vmatpush1.msra.mxu0 0.0
        %317 = vmatprep.subr.mxu0 0.0
        %318 = vmatpush1.msra.mxu0 0.0
        %319 = vmatprep.subr.mxu0 0.0
        %320 = vmatpush1.msra.mxu0 0.0
        %321 = vmatprep.mubr.f32.mxu0 0.0
        %322 = vmatmul.mubr.f32.gmra.mrb[0].mxu0 %v255
        %v323 = vpop.f32.mrb[0].mxu0
        %v324 = vadd.f32 0.0, %v323
        %v325 = vpop.f32.mrb[0].mxu0
        %326 = vdwg.mxu0
        %v327 = vmul.f32 %v253, %v324
        %v329 = vsel %vm247, %v246, 0
        %331 = vmatprep.subr.mxu0 0.0
        %332 = vmatpush1.msra.mxu0 %v327
        %333 = vmatprep.subr.mxu0 0.0
        %334 = vmatpush1.msra.mxu0 0.0
        %335 = vmatprep.subr.mxu0 0.0
        %336 = vmatpush1.msra.mxu0 0.0
        %337 = vmatprep.subr.mxu0 0.0
        %338 = vmatpush1.msra.mxu0 0.0
        %339 = vmatprep.subr.mxu0 0.0
        %340 = vmatpush1.msra.mxu0 0.0
        %341 = vmatprep.subr.mxu0 0.0
        %342 = vmatpush1.msra.mxu0 0.0
        %343 = vmatprep.subr.mxu0 0.0
        %344 = vmatpush1.msra.mxu0 0.0
        %345 = vmatprep.subr.mxu0 0.0
        %346 = vmatpush1.msra.mxu0 0.0
        %347 = vmatprep.subr.mxu0 0.0
        %348 = vmatpush1.msra.mxu0 0.0
        %349 = vmatprep.subr.mxu0 0.0
        %350 = vmatpush1.msra.mxu0 0.0
        %351 = vmatprep.subr.mxu0 0.0
        %352 = vmatpush1.msra.mxu0 0.0
        %353 = vmatprep.subr.mxu0 0.0
        %354 = vmatpush1.msra.mxu0 0.0
        %355 = vmatprep.subr.mxu0 0.0
        %356 = vmatpush1.msra.mxu0 0.0
        %357 = vmatprep.subr.mxu0 0.0
        %358 = vmatpush1.msra.mxu0 0.0
        %359 = vmatprep.subr.mxu0 0.0
        %360 = vmatpush1.msra.mxu0 0.0
        %361 = vmatprep.subr.mxu0 0.0
        %362 = vmatpush1.msra.mxu0 0.0
        %363 = vmatprep.subr.mxu0 0.0
        %364 = vmatpush1.msra.mxu0 0.0
        %365 = vmatprep.subr.mxu0 0.0
        %366 = vmatpush1.msra.mxu0 0.0
        %367 = vmatprep.subr.mxu0 0.0
        %368 = vmatpush1.msra.mxu0 0.0
        %369 = vmatprep.subr.mxu0 0.0
        %370 = vmatpush1.msra.mxu0 0.0
        %371 = vmatprep.subr.mxu0 0.0
        %372 = vmatpush1.msra.mxu0 0.0
        %373 = vmatprep.subr.mxu0 0.0
        %374 = vmatpush1.msra.mxu0 0.0
        %375 = vmatprep.subr.mxu0 0.0
        %376 = vmatpush1.msra.mxu0 0.0
        %377 = vmatprep.subr.mxu0 0.0
        %378 = vmatpush1.msra.mxu0 0.0
        %379 = vmatprep.subr.mxu0 0.0
        %380 = vmatpush1.msra.mxu0 0.0
        %381 = vmatprep.subr.mxu0 0.0
        %382 = vmatpush1.msra.mxu0 0.0
        %383 = vmatprep.subr.mxu0 0.0
        %384 = vmatpush1.msra.mxu0 0.0
        %385 = vmatprep.subr.mxu0 0.0
        %386 = vmatpush1.msra.mxu0 0.0
        %387 = vmatprep.subr.mxu0 0.0
        %388 = vmatpush1.msra.mxu0 0.0
        %389 = vmatprep.subr.mxu0 0.0
        %390 = vmatpush1.msra.mxu0 0.0
        %391 = vmatprep.subr.mxu0 0.0
        %392 = vmatpush1.msra.mxu0 0.0
        %393 = vmatprep.subr.mxu0 0.0
        %394 = vmatpush1.msra.mxu0 0.0
        %395 = vmatprep.mubr.f32.mxu0 0.0
        %396 = vmatmul.mubr.f32.gmra.mrb[0].mxu0 %v329
        %v397 = vpop.f32.mrb[0].mxu0
        %v398 = vadd.f32 0.0, %v397
        %v399 = vpop.f32.mrb[0].mxu0
        %400 = vdwg.mxu0
        %v401 = vmul.f32 %v253, %v398
        %v402 = vlaneseq
        %v403 = vshrl.u32 %v402, 7
        %v404 = vsub.s32 0, %v403
        %v405 = vrot.slane %v237, %v404
        %v406 = vadd.f32 %v401, %v405
        %v407 = vmax.f32 %v406, 0.0
        %408 = vmatprep.subr.mxu0 0.0
        %409 = vmatpush1.msra.mxu0 %v205
        %410 = vmatprep.subr.mxu0 0.0
        %411 = vmatpush1.msra.mxu0 %v206
        %412 = vmatprep.subr.mxu0 0.0
        %413 = vmatpush1.msra.mxu0 %v207
        %414 = vmatprep.subr.mxu0 0.0
        %415 = vmatpush1.msra.mxu0 %v208
        %416 = vmatprep.subr.mxu0 0.0
        %417 = vmatpush1.msra.mxu0 %v209
        %418 = vmatprep.subr.mxu0 0.0
        %419 = vmatpush1.msra.mxu0 %v210
        %420 = vmatprep.subr.mxu0 0.0
        %421 = vmatpush1.msra.mxu0 %v211
        %422 = vmatprep.subr.mxu0 0.0
        %423 = vmatpush1.msra.mxu0 %v212
        %424 = vmatprep.subr.mxu0 0.0
        %425 = vmatpush1.msra.mxu0 %v213
        %426 = vmatprep.subr.mxu0 0.0
        %427 = vmatpush1.msra.mxu0 %v214
        %428 = vmatprep.subr.mxu0 0.0
        %429 = vmatpush1.msra.mxu0 %v215
        %430 = vmatprep.subr.mxu0 0.0
        %431 = vmatpush1.msra.mxu0 %v216
        %432 = vmatprep.subr.mxu0 0.0
        %433 = vmatpush1.msra.mxu0 %v217
        %434 = vmatprep.subr.mxu0 0.0
        %435 = vmatpush1.msra.mxu0 %v218
        %436 = vmatprep.subr.mxu0 0.0
        %437 = vmatpush1.msra.mxu0 %v219
        %438 = vmatprep.subr.mxu0 0.0
        %439 = vmatpush1.msra.mxu0 %v220
        %440 = vmatprep.subr.mxu0 0.0
        %441 = vmatpush1.msra.mxu0 0.0
        %442 = vmatprep.subr.mxu0 0.0
        %443 = vmatpush1.msra.mxu0 0.0
        %444 = vmatprep.subr.mxu0 0.0
        %445 = vmatpush1.msra.mxu0 0.0
        %446 = vmatprep.subr.mxu0 0.0
        %447 = vmatpush1.msra.mxu0 0.0
        %448 = vmatprep.subr.mxu0 0.0
        %449 = vmatpush1.msra.mxu0 0.0
        %450 = vmatprep.subr.mxu0 0.0
        %451 = vmatpush1.msra.mxu0 0.0
        %452 = vmatprep.subr.mxu0 0.0
        %453 = vmatpush1.msra.mxu0 0.0
        %454 = vmatprep.subr.mxu0 0.0
        %455 = vmatpush1.msra.mxu0 0.0
        %456 = vmatprep.subr.mxu0 0.0
        %457 = vmatpush1.msra.mxu0 0.0
        %458 = vmatprep.subr.mxu0 0.0
        %459 = vmatpush1.msra.mxu0 0.0
        %460 = vmatprep.subr.mxu0 0.0
        %461 = vmatpush1.msra.mxu0 0.0
        %462 = vmatprep.subr.mxu0 0.0
        %463 = vmatpush1.msra.mxu0 0.0
        %464 = vmatprep.subr.mxu0 0.0
        %465 = vmatpush1.msra.mxu0 0.0
        %466 = vmatprep.subr.mxu0 0.0
        %467 = vmatpush1.msra.mxu0 0.0
        %468 = vmatprep.subr.mxu0 0.0
        %469 = vmatpush1.msra.mxu0 0.0
        %470 = vmatprep.subr.mxu0 0.0
        %471 = vmatpush1.msra.mxu0 0.0
        %472 = vmatprep.mubr.f32.mxu0 0.0
        %473 = vmatmul.mubr.f32.gmra.mrb[0].mxu0 %v407
        %v474 = vpop.f32.mrb[0].mxu0
        %v475 = vadd.f32 0.0, %v474
        %v476 = vpop.f32.mrb[0].mxu0
        %477 = vdwg.mxu0
        %v478 = vmul.f32 %v253, %v475
        %479 = vmatprep.subr.mxu0 0.0
        %480 = vmatpush1.msra.mxu0 %v478
        %481 = vmatprep.subr.mxu0 0.0
        %482 = vmatpush1.msra.mxu0 0.0
        %483 = vmatprep.subr.mxu0 0.0
        %484 = vmatpush1.msra.mxu0 0.0
        %485 = vmatprep.subr.mxu0 0.0
        %486 = vmatpush1.msra.mxu0 0.0
        %487 = vmatprep.subr.mxu0 0.0
        %488 = vmatpush1.msra.mxu0 0.0
        %489 = vmatprep.subr.mxu0 0.0
        %490 = vmatpush1.msra.mxu0 0.0
        %491 = vmatprep.subr.mxu0 0.0
        %492 = vmatpush1.msra.mxu0 0.0
        %493 = vmatprep.subr.mxu0 0.0
        %494 = vmatpush1.msra.mxu0 0.0
        %495 = vmatprep.subr.mxu0 0.0
        %496 = vmatpush1.msra.mxu0 0.0
        %497 = vmatprep.subr.mxu0 0.0
        %498 = vmatpush1.msra.mxu0 0.0
        %499 = vmatprep.subr.mxu0 0.0
        %500 = vmatpush1.msra.mxu0 0.0
        %501 = vmatprep.subr.mxu0 0.0
        %502 = vmatpush1.msra.mxu0 0.0
        %503 = vmatprep.subr.mxu0 0.0
        %504 = vmatpush1.msra.mxu0 0.0
        %505 = vmatprep.subr.mxu0 0.0
        %506 = vmatpush1.msra.mxu0 0.0
        %507 = vmatprep.subr.mxu0 0.0
        %508 = vmatpush1.msra.mxu0 0.0
        %509 = vmatprep.subr.mxu0 0.0
        %510 = vmatpush1.msra.mxu0 0.0
        %511 = vmatprep.subr.mxu0 0.0
        %512 = vmatpush1.msra.mxu0 0.0
        %513 = vmatprep.subr.mxu0 0.0
        %514 = vmatpush1.msra.mxu0 0.0
        %515 = vmatprep.subr.mxu0 0.0
        %516 = vmatpush1.msra.mxu0 0.0
        %517 = vmatprep.subr.mxu0 0.0
        %518 = vmatpush1.msra.mxu0 0.0
        %519 = vmatprep.subr.mxu0 0.0
        %520 = vmatpush1.msra.mxu0 0.0
        %521 = vmatprep.subr.mxu0 0.0
        %522 = vmatpush1.msra.mxu0 0.0
        %523 = vmatprep.subr.mxu0 0.0
        %524 = vmatpush1.msra.mxu0 0.0
        %525 = vmatprep.subr.mxu0 0.0
        %526 = vmatpush1.msra.mxu0 0.0
        %527 = vmatprep.subr.mxu0 0.0
        %528 = vmatpush1.msra.mxu0 0.0
        %529 = vmatprep.subr.mxu0 0.0
        %530 = vmatpush1.msra.mxu0 0.0
        %531 = vmatprep.subr.mxu0 0.0
        %532 = vmatpush1.msra.mxu0 0.0
        %533 = vmatprep.subr.mxu0 0.0
        %534 = vmatpush1.msra.mxu0 0.0
        %535 = vmatprep.subr.mxu0 0.0
        %536 = vmatpush1.msra.mxu0 0.0
        %537 = vmatprep.subr.mxu0 0.0
        %538 = vmatpush1.msra.mxu0 0.0
        %539 = vmatprep.subr.mxu0 0.0
        %540 = vmatpush1.msra.mxu0 0.0
        %541 = vmatprep.subr.mxu0 0.0
        %542 = vmatpush1.msra.mxu0 0.0
        %543 = vmatprep.mubr.f32.mxu0 0.0
        %544 = vmatmul.mubr.f32.gmra.mrb[0].mxu0 %v329
        %v545 = vpop.f32.mrb[0].mxu0
        %v546 = vadd.f32 0.0, %v545
        %v547 = vpop.f32.mrb[0].mxu0
        %548 = vdwg.mxu0
        %v549 = vmul.f32 %v253, %v546
        %v550 = vlaneseq
        %v551 = vshrl.u32 %v550, 7
        %v552 = vsub.s32 0, %v551
        %v553 = vrot.slane %v238, %v552
        %v554 = vadd.f32 %v549, %v553
        %v555 = vmax.f32 %v554, 0.0
        %v556 = vrot.slane %v555, 4
        %v557 = vadd.f32 %v555, %v556
        %v558 = vrot.slane %v557, 2
        %v559 = vadd.f32 %v557, %v558
        %v560 = vrot.slane %v559, 1
        %v561 = vadd.f32 %v559, %v560
        %562 = vmatprep.subr.mxu0 0.0
        %563 = vmatpush1.msra.mxu0 %v221
        %564 = vmatprep.subr.mxu0 0.0
        %565 = vmatpush1.msra.mxu0 %v222
        %566 = vmatprep.subr.mxu0 0.0
        %567 = vmatpush1.msra.mxu0 %v223
        %568 = vmatprep.subr.mxu0 0.0
        %569 = vmatpush1.msra.mxu0 %v224
        %570 = vmatprep.subr.mxu0 0.0
        %571 = vmatpush1.msra.mxu0 %v225
        %572 = vmatprep.subr.mxu0 0.0
        %573 = vmatpush1.msra.mxu0 %v226
        %574 = vmatprep.subr.mxu0 0.0
        %575 = vmatpush1.msra.mxu0 %v227
        %576 = vmatprep.subr.mxu0 0.0
        %577 = vmatpush1.msra.mxu0 %v228
        %578 = vmatprep.subr.mxu0 0.0
        %579 = vmatpush1.msra.mxu0 %v229
        %580 = vmatprep.subr.mxu0 0.0
        %581 = vmatpush1.msra.mxu0 %v230
        %582 = vmatprep.subr.mxu0 0.0
        %583 = vmatpush1.msra.mxu0 %v231
        %584 = vmatprep.subr.mxu0 0.0
        %585 = vmatpush1.msra.mxu0 %v232
        %586 = vmatprep.subr.mxu0 0.0
        %587 = vmatpush1.msra.mxu0 %v233
        %588 = vmatprep.subr.mxu0 0.0
        %589 = vmatpush1.msra.mxu0 %v234
        %590 = vmatprep.subr.mxu0 0.0
        %591 = vmatpush1.msra.mxu0 %v235
        %592 = vmatprep.subr.mxu0 0.0
        %593 = vmatpush1.msra.mxu0 %v236
        %594 = vmatprep.subr.mxu0 0.0
        %595 = vmatpush1.msra.mxu0 0.0
        %596 = vmatprep.subr.mxu0 0.0
        %597 = vmatpush1.msra.mxu0 0.0
        %598 = vmatprep.subr.mxu0 0.0
        %599 = vmatpush1.msra.mxu0 0.0
        %600 = vmatprep.subr.mxu0 0.0
        %601 = vmatpush1.msra.mxu0 0.0
        %602 = vmatprep.subr.mxu0 0.0
        %603 = vmatpush1.msra.mxu0 0.0
        %604 = vmatprep.subr.mxu0 0.0
        %605 = vmatpush1.msra.mxu0 0.0
        %606 = vmatprep.subr.mxu0 0.0
        %607 = vmatpush1.msra.mxu0 0.0
        %608 = vmatprep.subr.mxu0 0.0
        %609 = vmatpush1.msra.mxu0 0.0
        %610 = vmatprep.subr.mxu0 0.0
        %611 = vmatpush1.msra.mxu0 0.0
        %612 = vmatprep.subr.mxu0 0.0
        %613 = vmatpush1.msra.mxu0 0.0
        %614 = vmatprep.subr.mxu0 0.0
        %615 = vmatpush1.msra.mxu0 0.0
        %616 = vmatprep.subr.mxu0 0.0
        %617 = vmatpush1.msra.mxu0 0.0
        %618 = vmatprep.subr.mxu0 0.0
        %619 = vmatpush1.msra.mxu0 0.0
        %620 = vmatprep.subr.mxu0 0.0
        %621 = vmatpush1.msra.mxu0 0.0
        %622 = vmatprep.subr.mxu0 0.0
        %623 = vmatpush1.msra.mxu0 0.0
        %624 = vmatprep.subr.mxu0 0.0
        %625 = vmatpush1.msra.mxu0 0.0
        %626 = vmatprep.mubr.f32.mxu0 0.0
        %627 = vmatmul.mubr.f32.gmra.mrb[0].mxu0 %v561
        %v628 = vpop.f32.mrb[0].mxu0
        %v629 = vadd.f32 %v239, %v628
        %v630 = vpop.f32.mrb[0].mxu0
        %631 = vdwg.mxu0
        %632 = vst [vmem:[%s197] sm:$0x1] %v629
        %s633 = sand.u32 %s101, 1
        %s634 = scalar_lea.sflag [#allocation4], %s633
        %s635 = sand.u32 %s101, 1
        %s636 = scalar_lea.vmem [#allocation5], %s635
        // Predicated region
        $region37: #{gnn_forward_batched.1} parent=31 // pred_check
          %p637 = pneg %p111
        $region38: #{gnn_forward_batched.1} parent=31 // pred_check_branch
          %639 = sbr.rel (%p637) target = $region40
        $region39: #{gnn_forward_batched.1} parent=31 // pred_region
          %s641 = ssub.s32 16, 16
          %642 = vsyncadd %s634, %s641
          %s643 = smul.addr %s20, 16
          %s644 = scalar_lea.hbm %s3, %s643
          %s646 = sshll.u32 %s636, 4
          %s647 = int_to_ptr.vmem [resolvable:$true] %s646
          %649 = dma.vmem_to_hbm [thread:$0]  %s647, 16, %s644, %s634
        $region40: #{gnn_forward_batched.1} parent=31 // pred_fallthru
          _
      $region32: #{gnn_forward_batched.1} parent=5 // pred_fallthru
        _
      %p650 = scmp.le.s32.totalorder 2, %s15
      // Predicated region
      $region41: #{gnn_forward_batched.1} parent=5 // pred_check
        %p651 = pneg %p650
      $region42: #{gnn_forward_batched.1} parent=5 // pred_check_branch
        %653 = sbr.rel (%p651) target = $region44
      $region43: #{gnn_forward_batched.1} parent=5 // pred_region
        %s654 = ssub.s32 %s15, 2
        // Predicated region
        $region45: #{gnn_forward_batched.1} parent=43 // pred_check
          %p655 = pneg %p117
        $region46: #{gnn_forward_batched.1} parent=43 // pred_check_branch
          %657 = sbr.rel (%p655) target = $region48
        $region47: #{gnn_forward_batched.1} parent=43 // pred_region
          %s658 = sand.u32 %s102, 1
          %s659 = scalar_lea.sflag [#allocation4], %s658
          %s660 = sand.u32 %s102, 1
          %s661 = scalar_lea.vmem [#allocation5], %s660
          %662 = dma.done %s659, 16
        $region48: #{gnn_forward_batched.1} parent=43 // pred_fallthru
          _
      $region44: #{gnn_forward_batched.1} parent=5 // pred_fallthru
        _
    $region6: #{gnn_forward_batched.1} parent=1 // loop_footer
      %s19 = sadd.s32 1, %s15
    $region7: #{gnn_forward_batched.1} parent=1 // loop_footer_branch
      %14 = sbr.rel target = $region3
    $region8: #{gnn_forward_batched.1} parent=1 // loop_exit
      _
    %663 = vsyncpa [#allocation3], 1
    %s664 = scalar_lea.sflag [#allocation3], 1
    %665 = vsyncpa %s664, 1
    %666 = vsyncpa [#allocation4], 1
    %s667 = scalar_lea.sflag [#allocation4], 1
    %668 = vsyncpa %s667, 1

</llo_original>
